<compile_context>
chip_gen: v7x
topology: tpu7x:2x2x1
jax: 0.10.0
libtpu: 0.0.40
codegen_flags: <defaults>
</compile_context>

<pallas_src>
import functools

import jax
import jax.numpy as jnp
from jax.experimental import pallas as pl
from jax.experimental.pallas import tpu as pltpu


_TARGET_BLOCK_BYTES = 4 * 1024 * 1024   # ~4 MiB blocks amortize ~0.35 us/step
_VMEM_LIMIT_BYTES = 32 * 1024 * 1024    # 2 ops x 2 bufs x 4 MiB = 16 MiB << 32
_CONTIG_ROW_BYTES = 4096                # below this, (tb, D) strided DMA runs
                                        # are too short -> use contiguous path


def _sublane_packing(itemsize):
    # rows per packed vreg sublane group: 8 (f32), 16 (bf16), 32 (int8/fp8)
    return 8 * max(1, 4 // int(itemsize))


def _pick_tb(B, row_bytes, itemsize):
    """Byte-targeted batch tile, snapped to sublane packing, >=2 steps if possible."""
    packing = _sublane_packing(itemsize)
    tb = min(B, max(packing, _TARGET_BLOCK_BYTES // max(1, row_bytes)))
    # v7x megacore: keep at least 2 grid steps on the parallel batch axis so
    # both TensorCores get work (no-op on 1-TC v5e/v6e).
    if B > packing:
        half = -(-((B + 1) // 2) // packing) * packing   # round_up(ceil(B/2))
        tb = min(tb, half)
    if tb >= B:
        return B
    return max(packing, (tb // packing) * packing)


def _cost(x):
    itemsize = jnp.dtype(x.dtype).itemsize
    return pl.CostEstimate(flops=0, transcendentals=0,
                           bytes_accessed=2 * x.size * itemsize)


def _is_identity_const(perm):
    """True iff perm is concrete (not traced) and equals the identity [0, 1]."""
    try:
        return int(perm[0]) == 0 and int(perm[1]) == 1
    except Exception:   # traced value -> unknown at trace time
        return False


# ---------------------------------------------------------------------------
# Contiguous path: (tb, 2*D) blocks, in-kernel lane-aligned half swap.
# ---------------------------------------------------------------------------
def _contig_kernel(half_d, perm_ref, x_ref, o_ref):
    @pl.when(perm_ref[0] == 0)
    def _():
        o_ref[...] = x_ref[...]

    @pl.when(perm_ref[0] != 0)          # != 0 so the output is always written
    def _():
        o_ref[:, :half_d] = x_ref[:, half_d:]
        o_ref[:, half_d:] = x_ref[:, :half_d]


def _shuffle_contiguous(x, perm):
    B, S, D = x.shape
    itemsize = jnp.dtype(x.dtype).itemsize
    tb = _pick_tb(B, S * D * itemsize, itemsize)
    x2 = x.reshape(B, S * D)            # contiguous reshape: layout-free
    out2 = pl.pallas_call(
        functools.partial(_contig_kernel, D),
        out_shape=jax.ShapeDtypeStruct((B, S * D), x.dtype),
        grid_spec=pltpu.PrefetchScalarGridSpec(
            num_scalar_prefetch=1,
            grid=(pl.cdiv(B, tb),),
            in_specs=[pl.BlockSpec((tb, S * D), lambda b, perm: (b, 0))],
            out_specs=pl.BlockSpec((tb, S * D), lambda b, perm: (b, 0)),
        ),
        compiler_params=pltpu.CompilerParams(
            dimension_semantics=("parallel",),
            vmem_limit_bytes=_VMEM_LIMIT_BYTES,
        ),
        cost_estimate=_cost(x),
    )(perm, x2)
    return out2.reshape(B, S, D)


# ---------------------------------------------------------------------------
# Strided path: perm encoded in the input BlockSpec index_map; body is a copy.
# ---------------------------------------------------------------------------
def _copy_kernel(perm_ref, x_ref, o_ref):
    del perm_ref                        # consumed by the index_maps only
    o_ref[...] = x_ref[...]


def _shuffle_strided(x, perm):
    B, S, D = x.shape
    itemsize = jnp.dtype(x.dtype).itemsize
    tb = _pick_tb(B, D * itemsize, itemsize)
    x2 = x.reshape(B, S * D)
    out2 = pl.pallas_call(
        _copy_kernel,
        out_shape=jax.ShapeDtypeStruct((B, S * D), x.dtype),
        grid_spec=pltpu.PrefetchScalarGridSpec(
            num_scalar_prefetch=1,
            grid=(pl.cdiv(B, tb), S),
            # read the source half selected by perm[s] ...
            in_specs=[pl.BlockSpec((tb, D), lambda b, s, perm: (b, perm[s]))],
            # ... and write it to output half s.
            out_specs=pl.BlockSpec((tb, D), lambda b, s, perm: (b, s)),
        ),
        compiler_params=pltpu.CompilerParams(
            dimension_semantics=("parallel", "parallel"),
            vmem_limit_bytes=_VMEM_LIMIT_BYTES,
        ),
        cost_estimate=_cost(x),
    )(perm, x2)
    return out2.reshape(B, S, D)


# ---------------------------------------------------------------------------
# Fallback (D % 128 != 0): batch-tiled (tb, 2, D) blocks, sublane swap.
# ---------------------------------------------------------------------------
def _fallback_kernel(perm_ref, x_ref, o_ref):
    @pl.when(perm_ref[0] == 0)
    def _():
        o_ref[...] = x_ref[...]

    @pl.when(perm_ref[0] != 0)          # != 0 so the output is always written
    def _():
        o_ref[:, 0:1, :] = x_ref[:, 1:2, :]
        o_ref[:, 1:2, :] = x_ref[:, 0:1, :]


def _shuffle_fallback(x, perm):
    # TODO(synk): a lane-major swap (reshape to (B, 2*D) + masked lane slices)
    # would improve vreg/store occupancy here; sublane swap kept for clarity.
    B, S, D = x.shape
    itemsize = jnp.dtype(x.dtype).itemsize
    tb = _pick_tb(B, S * D * itemsize, itemsize)
    return pl.pallas_call(
        _fallback_kernel,
        out_shape=jax.ShapeDtypeStruct(x.shape, x.dtype),
        grid_spec=pltpu.PrefetchScalarGridSpec(
            num_scalar_prefetch=1,
            grid=(pl.cdiv(B, tb),),
            # last two block dims equal the full array dims -> (8,128) rule ok
            in_specs=[pl.BlockSpec((tb, S, D), lambda b, perm: (b, 0, 0))],
            out_specs=pl.BlockSpec((tb, S, D), lambda b, perm: (b, 0, 0)),
        ),
        compiler_params=pltpu.CompilerParams(
            dimension_semantics=("parallel",),
            vmem_limit_bytes=_VMEM_LIMIT_BYTES,
        ),
        cost_estimate=_cost(x),
    )(perm, x)


# ---------------------------------------------------------------------------
# Public wrapper (mirrors shuffle_sample_.forward).
# ---------------------------------------------------------------------------
def shuffle_sample(x, perm, training=True):
    """x: (B, 2, D); perm: int32[2] permutation of {0,1} drawn per call by caller."""
    if not training:
        return x
    B, S, D = x.shape
    assert S == 2, "shuffle_sample_ requires shape[-2] == 2"

    # Identity short-circuit when perm is known at trace time: skips a full
    # HBM read+write pass (~50% of randperm(2) draws are identity).
    if _is_identity_const(perm):
        return x

    # Clamp to {0,1}: cheap insurance against OOB DMA when perm is used as a
    # block index in the strided path's index_map.
    perm = jnp.clip(perm.astype(jnp.int32), 0, 1)

    itemsize = jnp.dtype(x.dtype).itemsize
    if D % 128 != 0:
        return _shuffle_fallback(x, perm)
    if D * itemsize < _CONTIG_ROW_BYTES:
        return _shuffle_contiguous(x, perm)
    return _shuffle_strided(x, perm)


if __name__ == "__main__":
    key = jax.random.PRNGKey(0)
    kx, kp, kb = jax.random.split(key, 3)

    perms = (jnp.array([0, 1], jnp.int32),
             jnp.array([1, 0], jnp.int32),
             jax.random.permutation(kp, 2).astype(jnp.int32))

    jitted = jax.jit(functools.partial(shuffle_sample, training=True))

    # 1) Contiguous fast path (D % 128 == 0, small rows).
    x = jax.random.normal(kx, (16, 2, 128), dtype=jnp.float32)
    for perm in perms:
        ref = x[:, perm]
        out = jax.block_until_ready(shuffle_sample(x, perm, training=True))
        assert out.shape == x.shape and out.dtype == x.dtype
        assert jnp.allclose(out, ref)
        out_j = jax.block_until_ready(jitted(x, perm))   # perm traced under jit
        assert jnp.allclose(out_j, ref)

    # 2) Strided fast path (large rows -> perm drives the input index_map).
    x_big = jax.random.normal(kx, (16, 2, 2048), dtype=jnp.float32)
    for perm in perms[:2]:
        out = jax.block_until_ready(jitted(x_big, perm))
        assert jnp.allclose(out, x_big[:, perm])

    # 3) bf16 (sublane packing = 16) through the contiguous path.
    x_bf = jax.random.normal(kb, (32, 2, 128), dtype=jnp.bfloat16)
    for perm in perms[:2]:
        out = jax.block_until_ready(jitted(x_bf, perm))
        assert jnp.array_equal(out, x_bf[:, perm])

    # 4) Fallback path (D not a multiple of 128).
    x_small = jax.random.normal(kx, (8, 2, 64), dtype=jnp.float32)
    for perm in perms[:2]:
        out = jax.block_until_ready(jitted(x_small, perm))
        assert jnp.allclose(out, x_small[:, perm])

    # 5) Eval mode is identity.
    out_eval = jax.block_until_ready(shuffle_sample(x, perms[1], training=False))
    assert jnp.allclose(out_eval, x)

    print("KERNEL_OK")
</pallas_src>

<mosaic_0001>
module attributes {stable_mosaic.version = 11 : i64} {
  func.func @_contig_kernel(%arg0: i32, %arg1: memref<2xi32, #tpu.memory_space<smem>>, %arg2: memref<8x256xf32, #tpu.memory_space<vmem>>, %arg3: memref<8x256xf32, #tpu.memory_space<vmem>>) attributes {dimension_semantics = [#tpu.dimension_semantics<parallel>], iteration_bounds = array<i64: 2>, scalar_prefetch = 1 : i64, scratch_operands = 0 : i64, tpu.core_type = #tpu.core_type<tc>, window_params = [{transform_indices = @transform_0, window_bounds = array<i64: 8, 256>}, {transform_indices = @transform_1, window_bounds = array<i64: 8, 256>}]} {
    %c0 = arith.constant 0 : index
    %0 = memref.load %arg1[%c0] : memref<2xi32, #tpu.memory_space<smem>>
    %c0_i32 = arith.constant 0 : i32
    %1 = arith.cmpi eq, %0, %c0_i32 : i32
    %2 = arith.extui %1 : i1 to i32
    %c0_i32_0 = arith.constant 0 : i32
    %3 = arith.cmpi ne, %2, %c0_i32_0 : i32
    scf.if %3 {
      %c0_4 = arith.constant 0 : index
      %c0_5 = arith.constant 0 : index
      %8 = vector.load %arg2[%c0_4, %c0_5] : memref<8x256xf32, #tpu.memory_space<vmem>>, vector<8x256xf32>
      %c0_6 = arith.constant 0 : index
      %c0_7 = arith.constant 0 : index
      %9 = vector.load %arg3[%c0_6, %c0_7] : memref<8x256xf32, #tpu.memory_space<vmem>>, vector<8x256xf32>
      tpu.vector_store %arg3[%c0_6, %c0_7], %8 {strides = array<i32>} : memref<8x256xf32, #tpu.memory_space<vmem>>, vector<8x256xf32>,
    } else {
    }
    %c0_1 = arith.constant 0 : index
    %4 = memref.load %arg1[%c0_1] : memref<2xi32, #tpu.memory_space<smem>>
    %c0_i32_2 = arith.constant 0 : i32
    %5 = arith.cmpi ne, %4, %c0_i32_2 : i32
    %6 = arith.extui %5 : i1 to i32
    %c0_i32_3 = arith.constant 0 : i32
    %7 = arith.cmpi ne, %6, %c0_i32_3 : i32
    scf.if %7 {
      %c0_4 = arith.constant 0 : index
      %c128 = arith.constant 128 : index
      %8 = vector.load %arg2[%c0_4, %c128] : memref<8x256xf32, #tpu.memory_space<vmem>>, vector<8x128xf32>
      %c0_5 = arith.constant 0 : index
      %c0_6 = arith.constant 0 : index
      %9 = vector.load %arg3[%c0_5, %c0_6] : memref<8x256xf32, #tpu.memory_space<vmem>>, vector<8x128xf32>
      tpu.vector_store %arg3[%c0_5, %c0_6], %8 {strides = array<i32>} : memref<8x256xf32, #tpu.memory_space<vmem>>, vector<8x128xf32>,
      %c0_7 = arith.constant 0 : index
      %c0_8 = arith.constant 0 : index
      %10 = vector.load %arg2[%c0_7, %c0_8] : memref<8x256xf32, #tpu.memory_space<vmem>>, vector<8x128xf32>
      %c0_9 = arith.constant 0 : index
      %c128_10 = arith.constant 128 : index
      %11 = vector.load %arg3[%c0_9, %c128_10] : memref<8x256xf32, #tpu.memory_space<vmem>>, vector<8x128xf32>
      tpu.vector_store %arg3[%c0_9, %c128_10], %10 {strides = array<i32>} : memref<8x256xf32, #tpu.memory_space<vmem>>, vector<8x128xf32>,
    } else {
    }
    return
  }
  func.func @transform_0(%arg0: i32, %arg1: memref<2xi32, #tpu.memory_space<smem>>) -> (i32, i32) {
    %c0_i32 = arith.constant 0 : i32
    %c0_i32_0 = arith.constant 0 : i32
    return %arg0, %c0_i32 : i32, i32
  }
  func.func @transform_1(%arg0: i32, %arg1: memref<2xi32, #tpu.memory_space<smem>>) -> (i32, i32) {
    %c0_i32 = arith.constant 0 : i32
    %c0_i32_0 = arith.constant 0 : i32
    return %arg0, %c0_i32 : i32, i32
  }
}

</mosaic_0001>

<llo_original>
// kernel: shuffle_sample.1
$region0: #{shuffle_sample.1}
  #allocation0 [shape = 'u32[]', space=smem, size = 0x4, offset = 0x4, fixed_abs, tag = 'smem constant byte address 0x4 - core index']
  #allocation1 [shape = 'u32[144,128]{1,0:T(1,128)}', space=vmem, size = 0x12000, scoped, tag = 'internal scratch']
  #allocation2 [shape = 's32[1]{0}', space=sflag, size = 0x4, scoped, tag = 'scoped memory for shuffle_sample.1']
  #allocation3 [shape = 'u8[512]{0}', space=smem, size = 0x200, scoped, tag = 'prefetched SMEM operand 0']
  %s0 = inlined_call_operand.vmem [shape: s32[2], index: 0, kind: input, shape index: {}]
  %s1 = inlined_call_operand.vmem [shape: f32[16,256], index: 1, kind: input, shape index: {}]
  %s2 = inlined_call_operand.vmem [shape: f32[16,256], index: 2, kind: output, shape index: {}]
  %s3 = sld [smem:[#allocation0]]
  $region45: #{shuffle_sample.1} parent=0
    _
  %s5 = ssub.s32 1, %s3
  %s6 = scalar_select 0, %s5, %s3
  %s7 = sshll.u32 %s0, 4
  %s8 = int_to_ptr.vmem [resolvable:$true] %s7
  %10 = dma.vmem_to_smem %s8, 16, [#allocation3], [#allocation2]
  %11 = dma.done [#allocation2], 16
  %12 = sfence
  loop: start=0, step=1, limit=4
  $region2: #{shuffle_sample.1} parent=0 // loop_pre_header
    _
  $region3: #{shuffle_sample.1} parent=0 // loop_header
    %s14 = sphi 0, %s18
    %p15 = scmp.ge.s32.totalorder %s14, 4
    %s24 = sphi 0, %s26
    %s27 = sphi 0, %s24
    %s28 = sphi 0, %s27
    %s44 = sphi 0, %s28
    %s50 = sphi 0, %s52
    %s53 = sphi 0, %s50
    %s54 = sphi 0, %s53
    %s70 = sphi 0, %s54
  $region4: #{shuffle_sample.1} parent=0 // loop_header_branch
    %17 = sbr.rel (%p15) target = $region8
  $region5: #{shuffle_sample.1} parent=0 // loop_body
    %s19 = ssub.s32 %s14, 1
    %s20 = ssub.s32 %s14, 2
    %s21 = sadd.s32 %s14, 1
    %s22 = ssub.s32 %s14, %s21
    %p23 = scmp.eq.s32.totalorder %s22, 0
    %s25 = sadd.s32 %s24, 1
    %s26 = scalar_select %p23, %s24, %s25
    %p29 = pneg %p23
    %p30 = scmp.eq.s32.totalorder %s14, 1
    %p31 = por %p29, %p30
    %p32 = scmp.ne.s32.totalorder %s24, %s27
    %p33 = scmp.eq.s32.totalorder %s14, 0
    %p34 = por %p32, %p33
    %p35 = scmp.ne.s32.totalorder %s24, %s27
    %p36 = scmp.eq.s32.totalorder %s19, 1
    %p37 = por %p35, %p36
    %p38 = scmp.ne.s32.totalorder %s27, %s28
    %p39 = scmp.eq.s32.totalorder %s19, 0
    %p40 = por %p38, %p39
    %p41 = scmp.ne.s32.totalorder %s27, %s28
    %p42 = scmp.eq.s32.totalorder %s20, 1
    %p43 = por %p41, %p42
    %p45 = scmp.ne.s32.totalorder %s28, %s44
    %p46 = scmp.eq.s32.totalorder %s20, 0
    %p47 = por %p45, %p46
    %s48 = ssub.s32 %s14, %s21
    %p49 = scmp.eq.s32.totalorder %s48, 0
    %s51 = sadd.s32 %s50, 1
    %s52 = scalar_select %p49, %s50, %s51
    %p55 = pneg %p49
    %p56 = scmp.eq.s32.totalorder %s14, 1
    %p57 = por %p55, %p56
    %p58 = scmp.ne.s32.totalorder %s50, %s53
    %p59 = scmp.eq.s32.totalorder %s14, 0
    %p60 = por %p58, %p59
    %p61 = scmp.ne.s32.totalorder %s50, %s53
    %p62 = scmp.eq.s32.totalorder %s19, 1
    %p63 = por %p61, %p62
    %p64 = scmp.ne.s32.totalorder %s53, %s54
    %p65 = scmp.eq.s32.totalorder %s19, 0
    %p66 = por %p64, %p65
    %p67 = scmp.ne.s32.totalorder %s53, %s54
    %p68 = scmp.eq.s32.totalorder %s20, 1
    %p69 = por %p67, %p68
    %p71 = scmp.ne.s32.totalorder %s54, %s70
    %p72 = scmp.eq.s32.totalorder %s20, 0
    %p73 = por %p71, %p72
    %p74 = scmp.le.s32.totalorder 1, %s14
    %p75 = scmp.lt.s32.totalorder %s14, 3
    %p76 = pnand %p74, %p75
    %p77 = pneg %p76
    // Predicated region
    $region9: #{shuffle_sample.1} parent=5 // pred_check
      _
    $region10: #{shuffle_sample.1} parent=5 // pred_check_branch
      %79 = sbr.rel (%p76) target = $region12
    $region11: #{shuffle_sample.1} parent=5 // pred_region
      %s80 = ssub.s32 %s14, 1
    $region12: #{shuffle_sample.1} parent=5 // pred_fallthru
      _
    %p81 = scmp.lt.s32.totalorder %s14, 2
    // Predicated region
    $region13: #{shuffle_sample.1} parent=5 // pred_check
      %p82 = pneg %p81
    $region14: #{shuffle_sample.1} parent=5 // pred_check_branch
      %84 = sbr.rel (%p82) target = $region16
    $region15: #{shuffle_sample.1} parent=5 // pred_region
      // Predicated region
      $region17: #{shuffle_sample.1} parent=15 // pred_check
        %p85 = pneg %p34
      $region18: #{shuffle_sample.1} parent=15 // pred_check_branch
        %87 = sbr.rel (%p85) target = $region20
      $region19: #{shuffle_sample.1} parent=15 // pred_region
        %p88 = scmp.lt.s32.totalorder %s14, 1
        %s89 = scalar_select %p88, %s14, 1
        %s90 = smul.addr %s89, 2
        %s91 = smul.addr %s90, 8
        %s92 = scalar_lea.vmem %s1, %s91
      $region20: #{shuffle_sample.1} parent=15 // pred_fallthru
        _
    $region16: #{shuffle_sample.1} parent=5 // pred_fallthru
      _
    %p93 = scmp.le.s32.totalorder 1, %s14
    %p94 = scmp.lt.s32.totalorder %s14, 3
    %p95 = pnand %p93, %p94
    %p96 = pneg %p95
    // Predicated region
    $region21: #{shuffle_sample.1} parent=5 // pred_check
      _
    $region22: #{shuffle_sample.1} parent=5 // pred_check_branch
      %98 = sbr.rel (%p95) target = $region24
    $region23: #{shuffle_sample.1} parent=5 // pred_region
      %s99 = ssub.s32 %s14, 1
      %p100 = scmp.lt.s32.totalorder %s19, 1
      %s101 = scalar_select %p100, %s19, 1
      %s102 = smul.addr %s101, 2
      %s103 = smul.addr %s102, 8
      %s104 = scalar_lea.vmem %s1, %s103
      %p105 = pneg %p40
      %p106 = pneg %p37
      %p107 = pneg %p66
      %p108 = pneg %p63
      %p109 = scmp.lt.s32.totalorder %s19, 1
      %s110 = scalar_select %p109, %s19, 1
      %s111 = smul.addr %s110, 2
      %s112 = smul.addr %s111, 8
      %s113 = scalar_lea.vmem %s2, %s112
      %p114 = scmp.lt.s32.totalorder %s19, 1
      %s115 = scalar_select %p114, %s19, 1
      %s116 = smul.addr %s115, 2
      %s117 = smul.addr %s116, 8
      %s118 = scalar_lea.vmem %s1, %s117
      %p119 = scmp.lt.s32.totalorder %s19, 1
      %s120 = scalar_select %p119, %s19, 1
      %s121 = smul.addr %s120, 2
      %s122 = smul.addr %s121, 8
      %s123 = scalar_lea.vmem %s2, %s122
      %s124 = sld [smem:[#allocation3]]
      %p125 = scmp.eq.s32.totalorder %s124, 0
      // Predicated region
      $region25: #{shuffle_sample.1} parent=23 // pred_check
        %p126 = pneg %p125
      $region26: #{shuffle_sample.1} parent=23 // pred_check_branch
        %128 = sbr.rel (%p126) target = $region28
      $region27: #{shuffle_sample.1} parent=23 // pred_region
        %v129 = vld [vmem:[%s118] sm:$0xff]
        %v130 = vld [vmem:[%s118 + $0x8] sm:$0xff]
        %131 = vst [vmem:[%s123] sm:$0xff] %v129
        %132 = vst [vmem:[%s123 + $0x8] sm:$0xff] %v130
      $region28: #{shuffle_sample.1} parent=23 // pred_fallthru
        _
      %s133 = sld [smem:[#allocation3]]
      %p134 = scmp.ne.s32.totalorder %s133, 0
      // Predicated region
      $region29: #{shuffle_sample.1} parent=23 // pred_check
        %p135 = pneg %p134
      $region30: #{shuffle_sample.1} parent=23 // pred_check_branch
        %137 = sbr.rel (%p135) target = $region32
      $region31: #{shuffle_sample.1} parent=23 // pred_region
        %v138 = vld [vmem:[%s118 + $0x8] sm:$0xff]
        %139 = vst [vmem:[%s123] sm:$0xff] %v138
        %v140 = vld [vmem:[%s118] sm:$0xff]
        %141 = vst [vmem:[%s123 + $0x8] sm:$0xff] %v140
      $region32: #{shuffle_sample.1} parent=23 // pred_fallthru
        _
      %p142 = scmp.lt.s32.totalorder %s19, 1
      %s143 = scalar_select %p142, %s19, 1
      %s144 = smul.addr %s143, 2
      %s145 = smul.addr %s144, 8
      %s146 = scalar_lea.vmem %s2, %s145
      // Predicated region
      $region33: #{shuffle_sample.1} parent=23 // pred_check
        %p147 = pneg %p63
      $region34: #{shuffle_sample.1} parent=23 // pred_check_branch
        %149 = sbr.rel (%p147) target = $region36
      $region35: #{shuffle_sample.1} parent=23 // pred_region
        _
      $region36: #{shuffle_sample.1} parent=23 // pred_fallthru
        _
    $region24: #{shuffle_sample.1} parent=5 // pred_fallthru
      _
    %p150 = scmp.le.s32.totalorder 2, %s14
    // Predicated region
    $region37: #{shuffle_sample.1} parent=5 // pred_check
      %p151 = pneg %p150
    $region38: #{shuffle_sample.1} parent=5 // pred_check_branch
      %153 = sbr.rel (%p151) target = $region40
    $region39: #{shuffle_sample.1} parent=5 // pred_region
      %s154 = ssub.s32 %s14, 2
      // Predicated region
      $region41: #{shuffle_sample.1} parent=39 // pred_check
        %p155 = pneg %p69
      $region42: #{shuffle_sample.1} parent=39 // pred_check_branch
        %157 = sbr.rel (%p155) target = $region44
      $region43: #{shuffle_sample.1} parent=39 // pred_region
        %p158 = scmp.lt.s32.totalorder %s20, 1
        %s159 = scalar_select %p158, %s20, 1
        %s160 = smul.addr %s159, 2
        %s161 = smul.addr %s160, 8
        %s162 = scalar_lea.vmem %s2, %s161
      $region44: #{shuffle_sample.1} parent=39 // pred_fallthru
        _
    $region40: #{shuffle_sample.1} parent=5 // pred_fallthru
      _
  $region6: #{shuffle_sample.1} parent=0 // loop_footer
    %s18 = sadd.s32 1, %s14
  $region7: #{shuffle_sample.1} parent=0 // loop_footer_branch
    %13 = sbr.rel target = $region3
  $region8: #{shuffle_sample.1} parent=0 // loop_exit
    _

</llo_original>
